<compile_context>
chip_gen: v6e
topology: v6e:2x2x1
jax: 0.10.0
libtpu: 0.0.40
codegen_flags: <defaults>
</compile_context>

<pallas_src>
import math

import jax
import jax.numpy as jnp
from jax.experimental import pallas as pl
from jax.experimental.pallas import tpu as pltpu


# ---------------------------------------------------------------------------
# Kernel
# ---------------------------------------------------------------------------
def _odefuncg_kernel(t_ref, y_ref, wt_ref, aux_ref, o_ref):
    # t_ref  : SMEM [1, 1]    scalar time
    # y_ref  : VMEM [TB, Dp]  packed batch tile of the state (Dp = D * pack)
    # wt_ref : VMEM [Dp, Dp]  block-diagonal W[:D,1:].T (resident across grid)
    # aux_ref: VMEM [2, Dp]   row 0 = tiled W[:D,0], row 1 = tiled bias[:D]
    # o_ref  : VMEM [TB, Dp]
    t = t_ref[0, 0]
    b_eff = t * aux_ref[0:1, :] + aux_ref[1:2, :]            # [1, Dp], f32
    out = jnp.dot(y_ref[...], wt_ref[...],
                  preferred_element_type=jnp.float32)         # MXU
    o_ref[...] = (out + b_eff).astype(o_ref.dtype)            # 128-lane dense store


# ---------------------------------------------------------------------------
# Layout / tiling helpers
# ---------------------------------------------------------------------------
def _pick_pack(batch, dim):
    """Rows of y packed into one lane-dense 128-wide row (power of two)."""
    if 0 < dim < 128 and 128 % dim == 0:
        return math.gcd(128 // dim, batch)   # largest pow2 dividing both
    return 1


def _pick_batch_tile(packed_rows):
    """Packed-row tile + grid size (cdiv). 1024 rows x 128 lanes f32 = 512 KiB."""
    tile = 1024
    if packed_rows <= tile:
        return packed_rows, 1                # single full-extent block
    return tile, pl.cdiv(packed_rows, tile)  # tile % 8 == 0; last block padded


def prepare_params(weight, bias, input_dim, pack):
    """Hoist out of the ODE solver loop: done ONCE per set of weights.

    weight: [D+1, D+1] in PyTorch nn.Linear [out, in] layout.
    bias  : [D+1]
    Returns (wt_bd [D*pack, D*pack], aux [2, D*pack]).
    """
    D = input_dim
    wt = jnp.transpose(weight[:D, 1:]).astype(jnp.float32)            # [D, D]
    wt_bd = jnp.kron(jnp.eye(pack, dtype=jnp.float32), wt)            # block diag
    aux = jnp.stack([jnp.tile(weight[:D, 0], pack),
                     jnp.tile(bias[:D], pack)], axis=0).astype(jnp.float32)
    return wt_bd, aux


# ---------------------------------------------------------------------------
# Forward wrappers
# ---------------------------------------------------------------------------
def odefuncg_forward_prepared(t, y_view, wt_bd, aux):
    """Pallas forward on the packed view (use inside solver loops).

    y_view: [Bp, Dp] packed lane-dense view of y.
    """
    Bp, Dp = y_view.shape
    TB, num_tiles = _pick_batch_tile(Bp)
    t_arr = jnp.asarray(t, dtype=jnp.float32).reshape(1, 1)

    return pl.pallas_call(
        _odefuncg_kernel,
        out_shape=jax.ShapeDtypeStruct((Bp, Dp), y_view.dtype),
        grid=(num_tiles,),
        in_specs=[
            pl.BlockSpec(memory_space=pltpu.MemorySpace.SMEM),    # t scalar
            pl.BlockSpec((TB, Dp), lambda i: (i, 0)),             # y tile (pipelined)
            pl.BlockSpec((Dp, Dp), lambda i: (0, 0)),             # weight (resident)
            pl.BlockSpec((2, Dp), lambda i: (0, 0)),              # aux (resident)
        ],
        out_specs=pl.BlockSpec((TB, Dp), lambda i: (i, 0)),
        compiler_params=pltpu.CompilerParams(
            dimension_semantics=("parallel",),                    # megacore on v7x
        ),
    )(t_arr, y_view, wt_bd, aux)


def odefuncg_forward(t, y, weight, bias, input_dim):
    """Drop-in equivalent of ODEFuncG.forward(t, y).

    t      : scalar (python float or 0-d array)
    y      : [B, input_dim] float32
    weight : [input_dim+1, input_dim+1] float32 (nn.Linear [out, in] layout)
    bias   : [input_dim+1] float32
    returns: [B, input_dim] float32
    """
    B, D = y.shape
    assert D == input_dim
    pack = _pick_pack(B, D)
    wt_bd, aux = prepare_params(weight, bias, input_dim, pack)
    y_view = y.reshape(B // pack, D * pack)          # free row-major view
    out_view = odefuncg_forward_prepared(t, y_view, wt_bd, aux)
    return out_view.reshape(B, D)                    # free view back


# ---------------------------------------------------------------------------
# Init + demo
# ---------------------------------------------------------------------------
def init_params(key, input_dim):
    """Deterministic init mimicking nn.Linear default (uniform +/- 1/sqrt(fan_in))."""
    Dp1 = input_dim + 1
    kw, kb = jax.random.split(key)
    bound = 1.0 / jnp.sqrt(jnp.float32(Dp1))
    weight = jax.random.uniform(kw, (Dp1, Dp1), jnp.float32, -bound, bound)
    bias = jax.random.uniform(kb, (Dp1,), jnp.float32, -bound, bound)
    return weight, bias


if __name__ == "__main__":
    key = jax.random.PRNGKey(0)
    k_y, k_params = jax.random.split(key)

    batch = 8
    input_dim = 32
    t = 0.5

    y = jax.random.normal(k_y, (batch, input_dim), dtype=jnp.float32)
    weight, bias = init_params(k_params, input_dim)

    out = odefuncg_forward(t, y, weight, bias, input_dim)
    out = jax.block_until_ready(out)

    # Pure-JAX reference of the original PyTorch semantics.
    t_vec = jnp.full((batch, 1), t, dtype=jnp.float32)
    t_and_y = jnp.concatenate([t_vec, y], axis=1)
    ref = (t_and_y @ weight.T + bias)[:, :input_dim]

    assert out.shape == (batch, input_dim)
    assert jnp.allclose(out, ref, atol=1e-5, rtol=1e-5)

    print("KERNEL_OK")
</pallas_src>

<mosaic_0001>
module attributes {stable_mosaic.version = 11 : i64} {
  func.func @_odefuncg_kernel(%arg0: i32, %arg1: memref<1x1xf32, #tpu.memory_space<smem>>, %arg2: memref<2x128xf32, #tpu.memory_space<vmem>>, %arg3: memref<128x128xf32, #tpu.memory_space<vmem>>, %arg4: memref<2x128xf32, #tpu.memory_space<vmem>>, %arg5: memref<2x128xf32, #tpu.memory_space<vmem>>) attributes {dimension_semantics = [#tpu.dimension_semantics<parallel>], iteration_bounds = array<i64: 1>, scalar_prefetch = 0 : i64, scratch_operands = 0 : i64, tpu.core_type = #tpu.core_type<tc>, window_params = [{transform_indices = @transform_0, window_bounds = array<i64: 1, 1>}, {transform_indices = @transform_1, window_bounds = array<i64: 2, 128>}, {pipeline_mode = #tpu.pipeline_mode<synchronous>, transform_indices = @transform_2, window_bounds = array<i64: 128, 128>}, {pipeline_mode = #tpu.pipeline_mode<synchronous>, transform_indices = @transform_3, window_bounds = array<i64: 2, 128>}, {transform_indices = @transform_4, window_bounds = array<i64: 2, 128>}]} {
    %c0 = arith.constant 0 : index
    %c0_0 = arith.constant 0 : index
    %0 = memref.load %arg1[%c0, %c0_0] : memref<1x1xf32, #tpu.memory_space<smem>>
    %c0_1 = arith.constant 0 : index
    %c0_2 = arith.constant 0 : index
    %1 = vector.load %arg4[%c0_1, %c0_2] : memref<2x128xf32, #tpu.memory_space<vmem>>, vector<1x128xf32>
    %2 = vector.broadcast %0 : f32 to vector<1x128xf32>
    %3 = arith.mulf %2, %1 : vector<1x128xf32>
    %c1 = arith.constant 1 : index
    %c0_3 = arith.constant 0 : index
    %4 = vector.load %arg4[%c1, %c0_3] : memref<2x128xf32, #tpu.memory_space<vmem>>, vector<1x128xf32>
    %5 = arith.addf %3, %4 : vector<1x128xf32>
    %c0_4 = arith.constant 0 : index
    %c0_5 = arith.constant 0 : index
    %6 = vector.load %arg2[%c0_4, %c0_5] : memref<2x128xf32, #tpu.memory_space<vmem>>, vector<2x128xf32>
    %c0_6 = arith.constant 0 : index
    %c0_7 = arith.constant 0 : index
    %7 = vector.load %arg3[%c0_6, %c0_7] : memref<128x128xf32, #tpu.memory_space<vmem>>, vector<128x128xf32>
    %cst = arith.constant dense<0.000000e+00> : vector<2x128xf32>
    %8 = tpu.matmul %6, %7, %cst {dimension_numbers = #tpu.dot_dimension_numbers<[1], [0], [0], [1], [0, 0, 1, 1], [], []>} : vector<2x128xf32>, vector<128x128xf32>, vector<2x128xf32> -> vector<2x128xf32>
    %9 = vector.broadcast %5 : vector<1x128xf32> to vector<2x128xf32>
    %10 = arith.addf %8, %9 : vector<2x128xf32>
    %c0_8 = arith.constant 0 : index
    %c0_9 = arith.constant 0 : index
    %11 = vector.load %arg5[%c0_8, %c0_9] : memref<2x128xf32, #tpu.memory_space<vmem>>, vector<2x128xf32>
    tpu.vector_store %arg5[%c0_8, %c0_9], %10 {strides = array<i32>} : memref<2x128xf32, #tpu.memory_space<vmem>>, vector<2x128xf32>,
    return
  }
  func.func @transform_0(%arg0: i32) -> (i32, i32) {
    %c0_i32 = arith.constant 0 : i32
    %c0_i32_0 = arith.constant 0 : i32
    %c0_i32_1 = arith.constant 0 : i32
    return %c0_i32, %c0_i32_0 : i32, i32
  }
  func.func @transform_1(%arg0: i32) -> (i32, i32) {
    %c0_i32 = arith.constant 0 : i32
    %c0_i32_0 = arith.constant 0 : i32
    return %arg0, %c0_i32 : i32, i32
  }
  func.func @transform_2(%arg0: i32) -> (i32, i32) {
    %c0_i32 = arith.constant 0 : i32
    %c0_i32_0 = arith.constant 0 : i32
    %c0_i32_1 = arith.constant 0 : i32
    return %c0_i32, %c0_i32_0 : i32, i32
  }
  func.func @transform_3(%arg0: i32) -> (i32, i32) {
    %c0_i32 = arith.constant 0 : i32
    %c0_i32_0 = arith.constant 0 : i32
    %c0_i32_1 = arith.constant 0 : i32
    return %c0_i32, %c0_i32_0 : i32, i32
  }
  func.func @transform_4(%arg0: i32) -> (i32, i32) {
    %c0_i32 = arith.constant 0 : i32
    %c0_i32_0 = arith.constant 0 : i32
    return %arg0, %c0_i32 : i32, i32
  }
}

</mosaic_0001>

<llo_original>
// kernel: tpu_custom_call.1
$region0: #{tpu_custom_call.1}
  #allocation0 [shape = 'u32[]', space=smem, size = 0x4, offset = 0x4, fixed_abs, tag = 'smem constant byte address 0x4 - core index']
  #allocation1 [shape = 'u32[144,128]{1,0:T(1,128)}', space=vmem, size = 0x12000, scoped, tag = 'internal scratch']
  #allocation2 [shape = 'f32[1,1]{1,0:T(1,128)S(6)}', space=smem, size = 0x200, scoped, tag = 'scoped memory for tpu_custom_call.1']
  %s0 = inlined_call_operand.<no memory space> [shape: f32[1,1], index: 0, kind: input, shape index: {}]
  %s1 = inlined_call_operand.vmem [shape: f32[2,128], index: 1, kind: input, shape index: {}]
  %s2 = inlined_call_operand.hbm [shape: f32[128,128], index: 2, kind: input, shape index: {}]
  %s3 = inlined_call_operand.vmem [shape: f32[2,128], index: 3, kind: input, shape index: {}]
  %s4 = inlined_call_operand.hbm [shape: f32[2,128], index: 4, kind: output, shape index: {}]
  %s5 = sld [smem:[#allocation0]]
  $region30: #{tpu_custom_call.1} parent=0
    _
  %s7 = ssub.s32 1, %s5
  %s8 = scalar_select 0, %s7, %s5
  %9 = sst [smem:[#allocation2]] %s0
  $region1: #{tpu_custom_call.1} parent=0
    #allocation3 [shape = 'u8[65536]{0}', space=vmem, size = 0x10000, scoped, tag = 'input window, operand 2, single buffered']
    #allocation4 [shape = 's32[1]{0}', space=sflag, size = 0x4, scoped, tag = 'scoped memory for tpu_custom_call.1']
    #allocation5 [shape = 's32[1]{0}', space=sflag, size = 0x4, scoped, tag = 'scoped memory for tpu_custom_call.1']
    #allocation6 [shape = 'u8[1024]{0}', space=vmem, size = 0x400, scoped, tag = 'output window, operand 0, single buffered']
    %10 = vsyncpa [#allocation4], 0
    %11 = vsyncpa [#allocation5], 0
    // Predicated region
    $region2: #{tpu_custom_call.1} parent=1 // pred_check
      _
    $region3: #{tpu_custom_call.1} parent=1 // pred_check_branch
      %13 = sbr.rel (0) target = $region5
    $region4: #{tpu_custom_call.1} parent=1 // pred_region
      _
    $region5: #{tpu_custom_call.1} parent=1 // pred_fallthru
      _
    // Predicated region
    $region6: #{tpu_custom_call.1} parent=1 // pred_check
      _
    $region7: #{tpu_custom_call.1} parent=1 // pred_check_branch
      %15 = sbr.rel (0) target = $region9
    $region8: #{tpu_custom_call.1} parent=1 // pred_region
      _
    $region9: #{tpu_custom_call.1} parent=1 // pred_fallthru
      _
    // Predicated region
    $region10: #{tpu_custom_call.1} parent=1 // pred_check
      _
    $region11: #{tpu_custom_call.1} parent=1 // pred_check_branch
      %17 = sbr.rel (0) target = $region13
    $region12: #{tpu_custom_call.1} parent=1 // pred_region
      %s19 = ssub.s32 2048, 2048
      %20 = vsyncadd [#allocation4], %s19
      %s21 = sshll.u32 [#allocation3], 4
      %s22 = int_to_ptr.vmem [resolvable:$true] %s21
      %27 = dma.hbm_to_vmem [thread:$0]  %s2, 2048, %s22, [#allocation4], 128, 128, 8
    $region13: #{tpu_custom_call.1} parent=1 // pred_fallthru
      _
    // Predicated region
    $region14: #{tpu_custom_call.1} parent=1 // pred_check
      _
    $region15: #{tpu_custom_call.1} parent=1 // pred_check_branch
      %29 = sbr.rel (0) target = $region17
    $region16: #{tpu_custom_call.1} parent=1 // pred_region
      _
    $region17: #{tpu_custom_call.1} parent=1 // pred_fallthru
      _
    // Predicated region
    $region18: #{tpu_custom_call.1} parent=1 // pred_check
      _
    $region19: #{tpu_custom_call.1} parent=1 // pred_check_branch
      %31 = sbr.rel (0) target = $region21
    $region20: #{tpu_custom_call.1} parent=1 // pred_region
      %32 = dma.done [#allocation4], 2048
    $region21: #{tpu_custom_call.1} parent=1 // pred_fallthru
      _
    %s33 = sld [smem:[#allocation2]]
    %v34 = vld [vmem:[%s3] sm:$0x1]
    %v35 = vstv %s33
    %v36 = vmul.f32 %v35, %v34
    %v37 = vld [vmem:[%s3 + $0x1] sm:$0x1]
    %v38 = vadd.f32 %v36, %v37
    %v39 = vld [vmem:[%s1] sm:$0x3]
    %v40 = vld [vmem:[#allocation3] sm:$0xff]
    %v41 = vld [vmem:[#allocation3 + $0x8] sm:$0xff]
    %v42 = vld [vmem:[#allocation3 + $0x10] sm:$0xff]
    %v43 = vld [vmem:[#allocation3 + $0x18] sm:$0xff]
    %v44 = vld [vmem:[#allocation3 + $0x20] sm:$0xff]
    %v45 = vld [vmem:[#allocation3 + $0x28] sm:$0xff]
    %v46 = vld [vmem:[#allocation3 + $0x30] sm:$0xff]
    %v47 = vld [vmem:[#allocation3 + $0x38] sm:$0xff]
    %v48 = vld [vmem:[#allocation3 + $0x40] sm:$0xff]
    %v49 = vld [vmem:[#allocation3 + $0x48] sm:$0xff]
    %v50 = vld [vmem:[#allocation3 + $0x50] sm:$0xff]
    %v51 = vld [vmem:[#allocation3 + $0x58] sm:$0xff]
    %v52 = vld [vmem:[#allocation3 + $0x60] sm:$0xff]
    %v53 = vld [vmem:[#allocation3 + $0x68] sm:$0xff]
    %v54 = vld [vmem:[#allocation3 + $0x70] sm:$0xff]
    %v55 = vld [vmem:[#allocation3 + $0x78] sm:$0xff]
    %v56 = vlaneseq
    %v57 = vshrl.u32 %v56, 7
    %v58 = vsub.s32 0, %v57
    %v59 = vrot.slane %v38, %v58
    %60 = vmatprep.subr.mxu0 0.0
    %61 = vmatpush1.msra.mxu0 %v55
    %62 = vmatprep.subr.mxu0 0.0
    %63 = vmatpush1.msra.mxu0 %v54
    %64 = vmatprep.subr.mxu0 0.0
    %65 = vmatpush1.msra.mxu0 %v53
    %66 = vmatprep.subr.mxu0 0.0
    %67 = vmatpush1.msra.mxu0 %v52
    %68 = vmatprep.subr.mxu0 0.0
    %69 = vmatpush1.msra.mxu0 %v51
    %70 = vmatprep.subr.mxu0 0.0
    %71 = vmatpush1.msra.mxu0 %v50
    %72 = vmatprep.subr.mxu0 0.0
    %73 = vmatpush1.msra.mxu0 %v49
    %74 = vmatprep.subr.mxu0 0.0
    %75 = vmatpush1.msra.mxu0 %v48
    %76 = vmatprep.subr.mxu0 0.0
    %77 = vmatpush1.msra.mxu0 %v47
    %78 = vmatprep.subr.mxu0 0.0
    %79 = vmatpush1.msra.mxu0 %v46
    %80 = vmatprep.subr.mxu0 0.0
    %81 = vmatpush1.msra.mxu0 %v45
    %82 = vmatprep.subr.mxu0 0.0
    %83 = vmatpush1.msra.mxu0 %v44
    %84 = vmatprep.subr.mxu0 0.0
    %85 = vmatpush1.msra.mxu0 %v43
    %86 = vmatprep.subr.mxu0 0.0
    %87 = vmatpush1.msra.mxu0 %v42
    %88 = vmatprep.subr.mxu0 0.0
    %89 = vmatpush1.msra.mxu0 %v41
    %90 = vmatprep.subr.mxu0 0.0
    %91 = vmatpush1.msra.mxu0 %v40
    %92 = vmatprep.subr.mxu0 0.0
    %93 = vmatpush2.msra.mxu0 0.0
    %94 = vmatprep.subr.mxu0 0.0
    %95 = vmatpush2.msra.mxu0 0.0
    %96 = vmatprep.subr.mxu0 0.0
    %97 = vmatpush2.msra.mxu0 0.0
    %98 = vmatprep.subr.mxu0 0.0
    %99 = vmatpush2.msra.mxu0 0.0
    %100 = vmatprep.subr.mxu0 0.0
    %101 = vmatpush2.msra.mxu0 0.0
    %102 = vmatprep.subr.mxu0 0.0
    %103 = vmatpush2.msra.mxu0 0.0
    %104 = vmatprep.subr.mxu0 0.0
    %105 = vmatpush2.msra.mxu0 0.0
    %106 = vmatprep.subr.mxu0 0.0
    %107 = vmatpush2.msra.mxu0 0.0
    %108 = vmatprep.subr.mxu0 0.0
    %109 = vmatpush2.msra.mxu0 0.0
    %110 = vmatprep.subr.mxu0 0.0
    %111 = vmatpush2.msra.mxu0 0.0
    %112 = vmatprep.subr.mxu0 0.0
    %113 = vmatpush2.msra.mxu0 0.0
    %114 = vmatprep.subr.mxu0 0.0
    %115 = vmatpush2.msra.mxu0 0.0
    %116 = vmatprep.subr.mxu0 0.0
    %117 = vmatpush2.msra.mxu0 0.0
    %118 = vmatprep.subr.mxu0 0.0
    %119 = vmatpush2.msra.mxu0 0.0
    %120 = vmatprep.subr.mxu0 0.0
    %121 = vmatpush2.msra.mxu0 0.0
    %122 = vmatprep.subr.mxu0 0.0
    %123 = vmatpush2.msra.mxu0 0.0
    %124 = vmatprep.mubr.f32.mxu0 0.0
    %125 = vmatmul.mubr.f32.gmra.mxu0 %v39
    %v126 = vpop.f32.mrf.mxu0
    %v127 = vadd.f32 %v59, %v126
    %v128 = vpop.f32.mrf.mxu0
    %129 = vdwg.mxu0
    %130 = vst [vmem:[#allocation6] sm:$0x3] %v127
    // Predicated region
    $region22: #{tpu_custom_call.1} parent=1 // pred_check
      _
    $region23: #{tpu_custom_call.1} parent=1 // pred_check_branch
      %132 = sbr.rel (0) target = $region25
    $region24: #{tpu_custom_call.1} parent=1 // pred_region
      %s134 = ssub.s32 32, 32
      %135 = vsyncadd [#allocation5], %s134
      %s137 = sshll.u32 [#allocation6], 4
      %s138 = int_to_ptr.vmem [resolvable:$true] %s137
      %140 = dma.vmem_to_hbm [thread:$0]  %s138, 32, %s4, [#allocation5]
    $region25: #{tpu_custom_call.1} parent=1 // pred_fallthru
      _
    // Predicated region
    $region26: #{tpu_custom_call.1} parent=1 // pred_check
      _
    $region27: #{tpu_custom_call.1} parent=1 // pred_check_branch
      %142 = sbr.rel (0) target = $region29
    $region28: #{tpu_custom_call.1} parent=1 // pred_region
      %143 = dma.done [#allocation5], 32
    $region29: #{tpu_custom_call.1} parent=1 // pred_fallthru
      _
    %144 = vsyncpa [#allocation4], 1
    %145 = vsyncpa [#allocation5], 1

</llo_original>
